<compile_context>
chip_gen: v5e
topology: v5e:2x2
jax: 0.10.0
libtpu: 0.0.40
codegen_flags: <defaults>
</compile_context>

<pallas_src>
import functools

import jax
import jax.numpy as jnp
from jax.experimental import pallas as pl
from jax.experimental.pallas import tpu as pltpu


def _round_up(x: int, m: int) -> int:
    return ((x + m - 1) // m) * m


def _readout_kernel(h_ref, o_ref, acc_ref, *, readout_type, num_nodes, tile_n):
    """Grid: (hidden_blocks ["parallel"], node_blocks ["arbitrary" reduction])."""
    ib = pl.program_id(1)  # node-block index (reduction axis, innermost)

    @pl.when(ib == 0)
    def _init():
        if readout_type == "max":
            acc_ref[...] = jnp.full_like(acc_ref, -jnp.inf)
        else:  # mean / sum
            acc_ref[...] = jnp.zeros_like(acc_ref)

    blk = h_ref[...]  # (tile_n, tile_h)
    if readout_type != "max":
        blk = blk.astype(jnp.float32)  # f32 accumulation for sum / mean

    # Mask out-of-range rows of the ragged last node block (static check:
    # only emitted when num_nodes does not divide evenly into tile_n blocks).
    if num_nodes % tile_n != 0:
        row = jax.lax.broadcasted_iota(jnp.int32, blk.shape, 0) + ib * tile_n
        if readout_type == "max":
            fill = jnp.array(-jnp.inf, dtype=blk.dtype)
        else:
            fill = jnp.array(0.0, dtype=blk.dtype)
        blk = jnp.where(row < num_nodes, blk, fill)

    # Fold the node block down to 8 sublanes with elementwise VPU ops; the
    # cross-sublane reduce is deferred to the epilogue.
    folded = blk.reshape(tile_n // 8, 8, blk.shape[-1])
    if readout_type == "max":
        acc_ref[...] = jnp.maximum(acc_ref[...], folded.max(axis=0))
    else:
        acc_ref[...] = acc_ref[...] + folded.sum(axis=0)

    @pl.when(ib == pl.num_programs(1) - 1)
    def _finalize():
        if readout_type == "max":
            res = acc_ref[...].max(axis=0, keepdims=True)
        else:
            res = acc_ref[...].sum(axis=0, keepdims=True)
            if readout_type == "mean":
                res = res * (1.0 / num_nodes)
        o_ref[...] = res.astype(o_ref.dtype)


def readout(h, readout_type: str = "mean"):
    """Graph-level readout of node embeddings h: [num_nodes, hidden_dim] -> [hidden_dim]."""
    if readout_type not in ("mean", "max", "sum"):
        raise ValueError(f"Unknown readout type: {readout_type}")
    num_nodes, hidden = h.shape

    # Lane-dense feature dimension (multiple of 128). Padded columns are
    # sliced away at the end, so the pad value is irrelevant.
    hidden_p = _round_up(hidden, 128)
    if hidden_p != hidden:
        h = jnp.pad(h, ((0, 0), (0, hidden_p - hidden)))

    # Feature-axis blocking: split into two blocks when wide enough so the
    # "parallel" hidden axis can be sharded across TensorCores (v7x).
    if hidden_p >= 256 and hidden_p % 256 == 0:
        tile_h = hidden_p // 2
    else:
        tile_h = hidden_p
    n_h_blocks = hidden_p // tile_h

    # Node-axis block: as large as a conservative VMEM budget allows
    # (~6 MiB per input block; x2 double-buffering stays well inside the
    # 32 MiB scoped default and v7x's 64 MiB physical VMEM).
    itemsize = jnp.dtype(h.dtype).itemsize
    budget_bytes = 6 * 1024 * 1024
    max_rows = max(8, (budget_bytes // (tile_h * itemsize)) // 8 * 8)
    tile_n = min(max_rows, 2048, _round_up(num_nodes, 8))
    tile_n = max(8, (tile_n // 8) * 8)
    n_node_blocks = pl.cdiv(num_nodes, tile_n)

    # Accumulator dtype: f32 for sum/mean, input dtype for max (exact).
    acc_dtype = h.dtype if readout_type == "max" else jnp.float32

    kernel = functools.partial(
        _readout_kernel,
        readout_type=readout_type,
        num_nodes=num_nodes,
        tile_n=tile_n,
    )

    out = pl.pallas_call(
        kernel,
        out_shape=jax.ShapeDtypeStruct((1, hidden_p), h.dtype),
        grid=(n_h_blocks, n_node_blocks),
        in_specs=[pl.BlockSpec((tile_n, tile_h), lambda hj, ib: (ib, hj))],
        out_specs=pl.BlockSpec((1, tile_h), lambda hj, ib: (0, hj)),
        scratch_shapes=[pltpu.VMEM((8, tile_h), acc_dtype)],
        compiler_params=pltpu.CompilerParams(
            dimension_semantics=("parallel", "arbitrary"),
        ),
    )(h)
    return out[0, :hidden]  # [hidden_dim]


if __name__ == "__main__":
    key = jax.random.PRNGKey(0)
    ok = True
    # (64, 32): aligned case; (37, 160): exercises ragged node masking,
    # hidden padding to 256 and the 2-block feature grid axis.
    for num_nodes, hidden in ((64, 32), (37, 160)):
        k = jax.random.fold_in(key, num_nodes)
        h = jax.random.normal(k, (num_nodes, hidden), dtype=jnp.float32)
        for rt, ref_fn in (
            ("mean", lambda x: jnp.mean(x, axis=0)),
            ("max", lambda x: jnp.max(x, axis=0)),
            ("sum", lambda x: jnp.sum(x, axis=0)),
        ):
            out = jax.block_until_ready(readout(h, readout_type=rt))
            ref = ref_fn(h)
            if not jnp.allclose(out, ref, atol=1e-5, rtol=1e-5):
                ok = False
                print(f"MISMATCH readout_type={rt} shape={(num_nodes, hidden)}")

    if ok:
        print("KERNEL_OK")
</pallas_src>

<mosaic_0001>
module attributes {stable_mosaic.version = 11 : i64} {
  func.func @_readout_kernel(%arg0: i32, %arg1: i32, %arg2: memref<64x128xf32, #tpu.memory_space<vmem>>, %arg3: memref<1x128xf32, #tpu.memory_space<vmem>>, %arg4: memref<8x128xf32, #tpu.memory_space<vmem>>) attributes {dimension_semantics = [#tpu.dimension_semantics<parallel>, #tpu.dimension_semantics<arbitrary>], iteration_bounds = array<i64: 1, 1>, scalar_prefetch = 0 : i64, scratch_operands = 1 : i64, tpu.core_type = #tpu.core_type<tc>, window_params = [{transform_indices = @transform_0, window_bounds = array<i64: 64, 128>}, {transform_indices = @transform_1, window_bounds = array<i64: 1, 128>}]} {
    %c0_i32 = arith.constant 0 : i32
    %0 = arith.cmpi eq, %arg1, %c0_i32 : i32
    %1 = arith.extui %0 : i1 to i32
    %c0_i32_0 = arith.constant 0 : i32
    %2 = arith.cmpi ne, %1, %c0_i32_0 : i32
    scf.if %2 {
      %cst_8 = arith.constant 0.000000e+00 : f32
      %12 = vector.broadcast %cst_8 : f32 to vector<8x128xf32>
      %c0_9 = arith.constant 0 : index
      %c0_10 = arith.constant 0 : index
      %13 = vector.load %arg4[%c0_9, %c0_10] : memref<8x128xf32, #tpu.memory_space<vmem>>, vector<8x128xf32>
      tpu.vector_store %arg4[%c0_9, %c0_10], %12 {strides = array<i32>} : memref<8x128xf32, #tpu.memory_space<vmem>>, vector<8x128xf32>,
    } else {
    }
    %c0 = arith.constant 0 : index
    %c0_1 = arith.constant 0 : index
    %3 = vector.load %arg2[%c0, %c0_1] : memref<64x128xf32, #tpu.memory_space<vmem>>, vector<64x128xf32>
    %4 = vector.shape_cast %3 : vector<64x128xf32> to vector<8x8x128xf32>
    %c0_2 = arith.constant 0 : index
    %c0_3 = arith.constant 0 : index
    %5 = vector.load %arg4[%c0_2, %c0_3] : memref<8x128xf32, #tpu.memory_space<vmem>>, vector<8x128xf32>
    %cst = arith.constant dense<0.000000e+00> : vector<8x128xf32>
    %6 = vector.multi_reduction <add>, %4, %cst [0] : vector<8x8x128xf32> to vector<8x128xf32>
    %7 = arith.addf %5, %6 : vector<8x128xf32>
    %c0_4 = arith.constant 0 : index
    %c0_5 = arith.constant 0 : index
    %8 = vector.load %arg4[%c0_4, %c0_5] : memref<8x128xf32, #tpu.memory_space<vmem>>, vector<8x128xf32>
    tpu.vector_store %arg4[%c0_4, %c0_5], %7 {strides = array<i32>} : memref<8x128xf32, #tpu.memory_space<vmem>>, vector<8x128xf32>,
    %c0_i32_6 = arith.constant 0 : i32
    %9 = arith.cmpi eq, %arg1, %c0_i32_6 : i32
    %10 = arith.extui %9 : i1 to i32
    %c0_i32_7 = arith.constant 0 : i32
    %11 = arith.cmpi ne, %10, %c0_i32_7 : i32
    scf.if %11 {
      %c0_8 = arith.constant 0 : index
      %c0_9 = arith.constant 0 : index
      %12 = vector.load %arg4[%c0_8, %c0_9] : memref<8x128xf32, #tpu.memory_space<vmem>>, vector<8x128xf32>
      %cst_10 = arith.constant dense<0.000000e+00> : vector<128xf32>
      %13 = vector.multi_reduction <add>, %12, %cst_10 [0] : vector<8x128xf32> to vector<128xf32>
      %14 = vector.shape_cast %13 : vector<128xf32> to vector<1x128xf32>
      %cst_11 = arith.constant 1.562500e-02 : f32
      %15 = vector.broadcast %cst_11 : f32 to vector<1x128xf32>
      %16 = arith.mulf %14, %15 : vector<1x128xf32>
      %c0_12 = arith.constant 0 : index
      %c0_13 = arith.constant 0 : index
      %17 = vector.load %arg3[%c0_12, %c0_13] : memref<1x128xf32, #tpu.memory_space<vmem>>, vector<1x128xf32>
      tpu.vector_store %arg3[%c0_12, %c0_13], %16 {strides = array<i32>} : memref<1x128xf32, #tpu.memory_space<vmem>>, vector<1x128xf32>,
    } else {
    }
    return
  }
  func.func @transform_0(%arg0: i32, %arg1: i32) -> (i32, i32) {
    %c0_i32 = arith.constant 0 : i32
    return %arg1, %arg0 : i32, i32
  }
  func.func @transform_1(%arg0: i32, %arg1: i32) -> (i32, i32) {
    %c0_i32 = arith.constant 0 : i32
    %c0_i32_0 = arith.constant 0 : i32
    return %c0_i32, %arg0 : i32, i32
  }
}

</mosaic_0001>

<llo_original>
// kernel: tpu_custom_call.1
$region0: #{tpu_custom_call.1}
  #allocation0 [shape = 'u32[]', space=smem, size = 0x4, offset = 0x4, fixed_abs, tag = 'smem constant byte address 0x4 - core index']
  #allocation1 [shape = 'u32[72,128]{1,0:T(1,128)}', space=vmem, size = 0x9000, scoped, tag = 'internal scratch']
  #allocation2 [shape = 'f32[8,128]{1,0:T(8,128)}', space=vmem, size = 0x1000, scoped, tag = 'scratch operand']
  %s0 = inlined_call_operand.hbm [shape: f32[64,128], index: 0, kind: input, shape index: {}]
  %s1 = inlined_call_operand.hbm [shape: f32[1,128], index: 1, kind: output, shape index: {}]
  %s2 = sld [smem:[#allocation0]]
  $region26: #{tpu_custom_call.1} parent=0
    _
  %s4 = ssub.s32 1, %s2
  %s5 = scalar_select 0, %s4, %s2
  $region1: #{tpu_custom_call.1} parent=0
    #allocation3 [shape = 'u8[32768]{0}', space=vmem, size = 0x8000, scoped, tag = 'input window, operand 0, single buffered']
    #allocation4 [shape = 's32[1]{0}', space=sflag, size = 0x4, scoped, tag = 'scoped memory for tpu_custom_call.1']
    #allocation5 [shape = 's32[1]{0}', space=sflag, size = 0x4, scoped, tag = 'scoped memory for tpu_custom_call.1']
    #allocation6 [shape = 'u8[512]{0}', space=vmem, size = 0x400, scoped, tag = 'output window, operand 0, single buffered']
    %6 = vsyncpa [#allocation4], 0
    %7 = vsyncpa [#allocation5], 0
    // Predicated region
    $region2: #{tpu_custom_call.1} parent=1 // pred_check
      _
    $region3: #{tpu_custom_call.1} parent=1 // pred_check_branch
      %9 = sbr.rel (0) target = $region5
    $region4: #{tpu_custom_call.1} parent=1 // pred_region
      %11 = vsyncadd [#allocation4], 0
      %s12 = sshll.u32 %s0, 4
      %s13 = int_to_ptr.hbm [resolvable:$true] %s12
      %s14 = sshll.u32 [#allocation3], 4
      %s15 = int_to_ptr.vmem [resolvable:$true] %s14
      %20 = dma.hbm_to_vmem [thread:$0]  %s13, 1024, %s15, [#allocation4], 128, 128, 8
    $region5: #{tpu_custom_call.1} parent=1 // pred_fallthru
      _
    // Predicated region
    $region6: #{tpu_custom_call.1} parent=1 // pred_check
      _
    $region7: #{tpu_custom_call.1} parent=1 // pred_check_branch
      %22 = sbr.rel (0) target = $region9
    $region8: #{tpu_custom_call.1} parent=1 // pred_region
      %24 = dma.done [#allocation4], 1024
    $region9: #{tpu_custom_call.1} parent=1 // pred_fallthru
      _
    %p25 = scmp.eq.s32.totalorder 0, 0
    // Predicated region
    $region10: #{tpu_custom_call.1} parent=1 // pred_check
      %p26 = pneg %p25
    $region11: #{tpu_custom_call.1} parent=1 // pred_check_branch
      %28 = sbr.rel (%p26) target = $region13
    $region12: #{tpu_custom_call.1} parent=1 // pred_region
      %29 = vst [vmem:[#allocation2] sm:$0xff] 0.0
    $region13: #{tpu_custom_call.1} parent=1 // pred_fallthru
      _
    %v30 = vld [vmem:[#allocation3] sm:$0xff]
    %v31 = vld [vmem:[#allocation3 + $0x8] sm:$0xff]
    %v32 = vld [vmem:[#allocation3 + $0x10] sm:$0xff]
    %v33 = vld [vmem:[#allocation3 + $0x18] sm:$0xff]
    %v34 = vld [vmem:[#allocation3 + $0x20] sm:$0xff]
    %v35 = vld [vmem:[#allocation3 + $0x28] sm:$0xff]
    %v36 = vld [vmem:[#allocation3 + $0x30] sm:$0xff]
    %v37 = vld [vmem:[#allocation3 + $0x38] sm:$0xff]
    %v38 = vld [vmem:[#allocation2] sm:$0xff]
    %v39 = vadd.f32 %v30, %v31
    %v40 = vadd.f32 %v39, %v32
    %v41 = vadd.f32 %v40, %v33
    %v42 = vadd.f32 %v41, %v34
    %v43 = vadd.f32 %v42, %v35
    %v44 = vadd.f32 %v43, %v36
    %v45 = vadd.f32 %v44, %v37
    %v46 = vadd.f32 %v38, %v45
    %47 = vst [vmem:[#allocation2] sm:$0xff] %v46
    // Predicated region
    $region14: #{tpu_custom_call.1} parent=1 // pred_check
      %p48 = pneg %p25
    $region15: #{tpu_custom_call.1} parent=1 // pred_check_branch
      %50 = sbr.rel (%p48) target = $region17
    $region16: #{tpu_custom_call.1} parent=1 // pred_region
      %v51 = vld [vmem:[#allocation2] sm:$0xff]
      %v52 = vrot.slane %v51, 4
      %v53 = vadd.f32 %v51, %v52
      %v54 = vrot.slane %v53, 2
      %v55 = vadd.f32 %v53, %v54
      %v56 = vrot.slane %v55, 1
      %v57 = vadd.f32 %v55, %v56
      %v58 = vmul.f32 %v57, 0.015625
      %59 = vst [vmem:[#allocation6] sm:$0x1] %v58
    $region17: #{tpu_custom_call.1} parent=1 // pred_fallthru
      _
    // Predicated region
    $region18: #{tpu_custom_call.1} parent=1 // pred_check
      _
    $region19: #{tpu_custom_call.1} parent=1 // pred_check_branch
      %61 = sbr.rel (0) target = $region21
    $region20: #{tpu_custom_call.1} parent=1 // pred_region
      %63 = vsyncadd [#allocation5], 0
      %s65 = sshll.u32 [#allocation6], 4
      %s66 = int_to_ptr.vmem [resolvable:$true] %s65
      %s67 = sshll.u32 %s1, 4
      %s68 = int_to_ptr.hbm [resolvable:$true] %s67
      %70 = dma.vmem_to_hbm [thread:$0]  %s66, 16, %s68, [#allocation5]
    $region21: #{tpu_custom_call.1} parent=1 // pred_fallthru
      _
    // Predicated region
    $region22: #{tpu_custom_call.1} parent=1 // pred_check
      _
    $region23: #{tpu_custom_call.1} parent=1 // pred_check_branch
      %72 = sbr.rel (0) target = $region25
    $region24: #{tpu_custom_call.1} parent=1 // pred_region
      %74 = dma.done [#allocation5], 16
    $region25: #{tpu_custom_call.1} parent=1 // pred_fallthru
      _
    %75 = vsyncpa [#allocation4], 1
    %76 = vsyncpa [#allocation5], 1

</llo_original>
